<compile_context>
chip_gen: v6e
topology: v6e:2x2x1
jax: 0.10.0
libtpu: 0.0.40
codegen_flags: <defaults>
</compile_context>

<pallas_src>
import functools

import jax
import jax.numpy as jnp
from jax.experimental import pallas as pl
from jax.experimental.pallas import tpu as pltpu


_VMEM_LIMIT = 64 * 1024 * 1024  # <= physical VMEM on v5e/v6e (128 MiB) and v7x (64 MiB)


def _round_up(a, b):
    return (a + b - 1) // b * b


# --------------------------------------------------------------------------
# Pallas kernel 1: fused gating
#   matmul + rank-based top-k mask + masked softmax + per-tile load/relevance sums
# --------------------------------------------------------------------------
def _gating_kernel(k, num_experts, n_valid, tile_n,
                   x_ref, wg_ref, gates_ref, rel_ref, load_ref):
    # f32 logits matmul keeps top-k selection bit-exact vs the f32 reference
    # (bf16 would be faster on v5e for large F but can flip near-tied experts).
    logits = jnp.dot(x_ref[...], wg_ref[...], preferred_element_type=jnp.float32)
    # rank[i, e] = #{ j : logit[i, j] > logit[i, e]  or (== and j < e) }
    # (tie-break by lower index, like torch.topk).
    lane = jax.lax.broadcasted_iota(jnp.int32, logits.shape, 1)
    rank = jnp.zeros_like(logits)
    for j in range(num_experts):  # num_experts is tiny -> static unroll, pure VPU work
        lj = logits[:, j:j + 1]
        beats = (lj > logits) | ((lj == logits) & (j < lane))
        rank = rank + beats.astype(jnp.float32)
    in_topk = rank < k
    # softmax over the selected top-k logits, scattered back to dense positions:
    m = jnp.max(logits, axis=-1, keepdims=True)          # row max is always in top-k
    e = jnp.where(in_topk, jnp.exp(logits - m), 0.0)
    gates = e / jnp.sum(e, axis=-1, keepdims=True)
    gates_ref[...] = gates

    # fused partial reductions (avoid a second HBM pass over gates in XLA):
    # mask padded rows so they do not contaminate load / relevance.
    row = jax.lax.broadcasted_iota(jnp.int32, gates.shape, 0) + pl.program_id(0) * tile_n
    valid = row < n_valid
    gv = jnp.where(valid, gates, 0.0)
    rel_tile = jnp.sum(gv, axis=0, keepdims=True)                                   # (1, NE)
    load_tile = jnp.sum(jnp.where(valid & (gates > 0), 1.0, 0.0), axis=0,
                        keepdims=True)                                              # (1, NE)
    # (8, NE) output block (sublane-aligned); each of the 8 rows carries 1/8 of the
    # partial so the wrapper-side sum over axis 0 recovers it exactly (power-of-two).
    rel_ref[...] = jnp.broadcast_to(rel_tile * 0.125, rel_ref.shape)
    load_ref[...] = jnp.broadcast_to(load_tile * 0.125, load_ref.shape)


def top_k_gates(x, w_gate, k, tile_n=2048):
    """Dense gates [N, NE], relevance=gates.sum(0), load=(gates>0).sum(0)."""
    N, F = x.shape
    NE = w_gate.shape[1]
    x = x.astype(jnp.float32)
    tile_n = min(tile_n, _round_up(N, 8))
    n_pad = _round_up(N, tile_n)
    if n_pad != N:
        x = jnp.pad(x, ((0, n_pad - N), (0, 0)))
    n_tiles = n_pad // tile_n
    kern = functools.partial(_gating_kernel, k, NE, N, tile_n)
    gates, rel_p, load_p = pl.pallas_call(
        kern,
        out_shape=(
            jax.ShapeDtypeStruct((n_pad, NE), jnp.float32),
            jax.ShapeDtypeStruct((8 * n_tiles, NE), jnp.float32),
            jax.ShapeDtypeStruct((8 * n_tiles, NE), jnp.float32),
        ),
        grid=(n_tiles,),
        in_specs=[
            pl.BlockSpec((tile_n, F), lambda i: (i, 0)),
            pl.BlockSpec((F, NE), lambda i: (0, 0)),
        ],
        out_specs=(
            pl.BlockSpec((tile_n, NE), lambda i: (i, 0)),
            pl.BlockSpec((8, NE), lambda i: (i, 0)),
            pl.BlockSpec((8, NE), lambda i: (i, 0)),
        ),
        compiler_params=pltpu.CompilerParams(
            dimension_semantics=("parallel",),
            vmem_limit_bytes=_VMEM_LIMIT),
    )(x, w_gate.astype(jnp.float32))
    return gates[:N], rel_p.sum(0), load_p.sum(0)


# --------------------------------------------------------------------------
# Pallas kernel 2: fully fused experts (in-kernel gathers, transposed orientation)
#   onehot_src/dst = (iota(N) == idx)                          (N, TE)
#   x_srcT = nodesT @ onehot_src ; x_dstT = nodesT @ onehot_dst     (F, TE)  MXU gather
#   g_srcT = gatesT @ onehot_src                               (NE, TE)  MXU gather
#   hT  = W1sT @ x_srcT + W1dT @ x_dstT + w1aT*attr + b1T ; relu     (NE*H, TE)
#   oT  = sigmoid(W2bdT @ hT + b2T)                            (NE, TE)
#   out = sum(g_srcT * oT, 0) / NE                             (1, TE) lane-dense
# --------------------------------------------------------------------------
def _experts_kernel(n_nodes, inv_ne,
                    idx_ref, attr_ref, nodesT_ref, gatesT_ref,
                    w1sT_ref, w1dT_ref, w1aT_ref, b1T_ref, w2T_ref, b2T_ref,
                    out_ref):
    tile_e = idx_ref.shape[1]
    src = idx_ref[0:1, :]                                              # (1, TE) int32
    dst = idx_ref[1:2, :]                                              # (1, TE) int32
    node_iota = jax.lax.broadcasted_iota(jnp.int32, (n_nodes, tile_e), 0)
    oh_src = node_iota == src                                          # (N, TE) bool
    oh_dst = node_iota == dst

    # in-kernel row gathers via one-hot MXU matmuls (0/1 one-hot -> exact selection).
    x_srcT = jnp.dot(nodesT_ref[...], oh_src.astype(jnp.bfloat16),
                     preferred_element_type=jnp.float32).astype(jnp.bfloat16)   # (F, TE)
    x_dstT = jnp.dot(nodesT_ref[...], oh_dst.astype(jnp.bfloat16),
                     preferred_element_type=jnp.float32).astype(jnp.bfloat16)   # (F, TE)
    g_srcT = jnp.dot(gatesT_ref[...], oh_src.astype(jnp.float32),
                     preferred_element_type=jnp.float32)                        # (NE, TE)

    # stacked expert layer 1 (f32 accumulation, attr/bias folded in the accumulate).
    h = jnp.dot(w1sT_ref[...], x_srcT, preferred_element_type=jnp.float32)
    h = h + jnp.dot(w1dT_ref[...], x_dstT, preferred_element_type=jnp.float32)
    h = h + w1aT_ref[...] * attr_ref[...]          # (NE*H,1)*(1,TE) outer broadcast (VPU)
    h = h + b1T_ref[...]
    h = jnp.maximum(h, 0.0)                        # relu in f32

    # stacked expert layer 2 (block-diagonal) + sigmoid.
    o = jnp.dot(w2T_ref[...], h.astype(jnp.bfloat16), preferred_element_type=jnp.float32)
    o = jax.nn.sigmoid(o + b2T_ref[...])           # (NE, TE), f32

    # gate-weighted mean over experts -> lane-dense (1, TE) output row.
    out_ref[...] = jnp.sum(g_srcT * o, axis=0, keepdims=True) * inv_ne


def gated_expert_scores(nodes, gates, src, dst, edge_attr, w1, b1, w2, b2,
                        tile_e=2048):
    """Per-edge gated expert scores [E] (== (gates[src] * expert_scores).mean(1))."""
    N, F = nodes.shape
    NE = gates.shape[1]
    E = src.shape[0]
    _, din, H = w1.shape
    NEH = NE * H

    # ---- stack + transpose expert weights (wrapper-side, one-time, tiny) ----
    w1_t = jnp.transpose(w1, (1, 0, 2)).reshape(din, NEH)   # (Din, NE*H), expert-major cols
    w1sT = jnp.transpose(w1_t[:F]).astype(jnp.bfloat16)                 # (NE*H, F)
    w1dT = jnp.transpose(w1_t[F:2 * F]).astype(jnp.bfloat16)            # (NE*H, F)
    w1aT = jnp.transpose(w1_t[2 * F:]).astype(jnp.float32)              # (NE*H, 1)
    b1T = b1.reshape(NEH, 1).astype(jnp.float32)
    eye = jnp.eye(NE, dtype=jnp.float32)
    w2T = (eye[:, :, None] * w2[None, :, :, 0]).reshape(NE, NEH).astype(jnp.bfloat16)
    b2T = b2.reshape(NE, 1).astype(jnp.float32)

    # ---- VMEM-resident node / gate tables (loaded once, constant index_map) ----
    nodesT = jnp.transpose(nodes).astype(jnp.bfloat16)                  # (F, N)
    gatesT = jnp.transpose(gates).astype(jnp.float32)                   # (NE, N)

    # ---- tile sizing: big lane-dense edge tiles, but
    #       * keep >=2 grid steps when E allows (v7x has 2 TCs to shard "parallel"),
    #       * bound the in-kernel (N, tile_e) one-hot footprint. ----
    tile_e = min(tile_e, _round_up(max(1, (E + 1) // 2), 128))
    onehot_cap = max(128, ((4 * 1024 * 1024) // max(4 * N, 1)) // 128 * 128)
    tile_e = max(128, min(tile_e, onehot_cap))
    assert tile_e % 128 == 0
    e_pad = _round_up(E, tile_e)

    # ---- lane-dense per-edge inputs: only indices + attr hit HBM (12 B/edge) ----
    srcdst = jnp.stack([src, dst]).astype(jnp.int32)                    # (2, E)
    attrT = edge_attr.reshape(1, E).astype(jnp.float32)                 # (1, E)
    if e_pad != E:
        pad = e_pad - E
        srcdst = jnp.pad(srcdst, ((0, 0), (0, pad)))   # pad with node 0; outputs sliced off
        attrT = jnp.pad(attrT, ((0, 0), (0, pad)))

    kern = functools.partial(_experts_kernel, N, 1.0 / NE)
    out = pl.pallas_call(
        kern,
        out_shape=jax.ShapeDtypeStruct((1, e_pad), jnp.float32),
        grid=(e_pad // tile_e,),
        in_specs=[
            pl.BlockSpec((2, tile_e), lambda i: (0, i)),   # src/dst indices (lane-dense)
            pl.BlockSpec((1, tile_e), lambda i: (0, i)),   # edge attr (lane-dense)
            pl.BlockSpec((F, N), lambda i: (0, 0)),        # node table, VMEM resident
            pl.BlockSpec((NE, N), lambda i: (0, 0)),       # gate table, VMEM resident
            pl.BlockSpec((NEH, F), lambda i: (0, 0)),
            pl.BlockSpec((NEH, F), lambda i: (0, 0)),
            pl.BlockSpec((NEH, 1), lambda i: (0, 0)),
            pl.BlockSpec((NEH, 1), lambda i: (0, 0)),
            pl.BlockSpec((NE, NEH), lambda i: (0, 0)),
            pl.BlockSpec((NE, 1), lambda i: (0, 0)),
        ],
        out_specs=pl.BlockSpec((1, tile_e), lambda i: (0, i)),
        compiler_params=pltpu.CompilerParams(
            dimension_semantics=("parallel",),
            vmem_limit_bytes=_VMEM_LIMIT),
    )(srcdst, attrT, nodesT, gatesT, w1sT, w1dT, w1aT, b1T, w2T, b2T)
    return out[0, :E]


# --------------------------------------------------------------------------
# moe forward (glue in plain JAX; data-dependent sort/unique stays eager)
# --------------------------------------------------------------------------
def cv_squared(x):
    eps = 1e-10
    x = x.astype(jnp.float32)
    if x.shape[0] == 1:
        return jnp.zeros((), jnp.float32)
    return jnp.var(x, ddof=1) / (jnp.mean(x) ** 2 + eps)  # torch.var is unbiased


def moe_forward(params, input_nodes, adjacency_index, temperature, data_shape,
                adjacency_attr, k_list, expert_select, loss_coef=0.01):
    del temperature, data_shape  # TODO(synk): only consumed by SpLearner internals
    k = expert_select

    # ---- noisy_top_k_gating (training=False => clean logits, no noise) ----
    gates, relevance, load = top_k_gates(input_nodes, params["w_gate"], k)
    loss_val = (cv_squared(relevance) + cv_squared(load)) * loss_coef

    src = adjacency_index[0]
    dst = adjacency_index[1]

    # ---- experts: fused in-kernel gathers + stacked MLPs + gating + mean (Pallas) ----
    gated_output = gated_expert_scores(
        input_nodes, gates, src, dst, adjacency_attr,
        params["w1"], params["b1"], params["w2"], params["b2"]
    )                                                               # [E]

    # ---- per-node edge budget + BinaryStep threshold mask (sort/unique glue) ----
    node_indices, edges_per_node = jnp.unique(src, return_counts=True)
    selected_k_per_node = jnp.sum(gates * k_list[None, :], axis=1)
    edges_selected = selected_k_per_node[node_indices] * edges_per_node
    edges_selected = jnp.round(edges_selected).astype(jnp.int32)
    edges_selected = jnp.where(edges_selected > 0, edges_selected,
                               jnp.ones_like(edges_selected))

    sorted_idx = jnp.argsort(-gated_output)                         # descending
    sorted_vals = gated_output[sorted_idx]
    sparse_idx0 = src[sorted_idx]
    sorted_idx_reorder = jnp.argsort(sparse_idx0, stable=True)      # stable ascending
    reordered_scores = sorted_vals[sorted_idx_reorder]

    start = jnp.concatenate(
        [jnp.zeros((1,), edges_per_node.dtype), jnp.cumsum(edges_per_node[:-1])]
    )
    end = jnp.abs(start + edges_selected - 1)
    node_thresholds = reordered_scores[end]
    aug_thresholds = jnp.repeat(node_thresholds, edges_per_node)

    # BinaryStep.forward: (x > 0).float()
    mask = (reordered_scores - aug_thresholds + 1e-12 > 0.0).astype(jnp.float32)

    # NOTE: mirrors the reference exactly — it index_selects by final_sort_idx and then
    # by sorted_idx (NOT the inverse of sorted_idx); we reproduce that verbatim.
    final_sort_idx = jnp.argsort(sorted_idx_reorder)
    mask = mask[final_sort_idx]
    mask = mask[sorted_idx]
    return mask, loss_val


# --------------------------------------------------------------------------
if __name__ == "__main__":
    # Small shapes: 16 nodes, 8 features, degree 8 -> 128 edges, 4 experts, hidden 32
    # (NE*H = 128 -> a full 128-wide stacked layer-1 MXU tile).
    N, F, NE, H, deg = 16, 8, 4, 32, 8
    E = N * deg
    Din = 2 * F + 1
    k_list = jnp.array([0.25, 0.5, 0.75, 1.0], jnp.float32)
    expert_select = 2

    key = jax.random.PRNGKey(0)
    ks = jax.random.split(key, 6)
    input_nodes = jax.random.normal(ks[0], (N, F), jnp.float32)
    src = jnp.repeat(jnp.arange(N, dtype=jnp.int32), deg)
    dst = jax.random.randint(ks[1], (E,), 0, N, dtype=jnp.int32)
    adjacency_index = jnp.stack([src, dst])
    adjacency_attr = jax.random.uniform(ks[2], (E, 1), jnp.float32)

    # Deterministic parameter init (module __init__ gives shapes; w_gate is drawn
    # randomly instead of zeros to avoid degenerate all-tied top-k).
    params = {
        "w_gate": 0.1 * jax.random.normal(ks[3], (F, NE), jnp.float32),
        # w_noise: unused in the deterministic (eval) gating path
        "w1": 0.1 * jax.random.normal(ks[4], (NE, Din, H), jnp.float32),
        "b1": jnp.zeros((NE, H), jnp.float32),
        "w2": 0.1 * jax.random.normal(ks[5], (NE, H, 1), jnp.float32),
        "b2": jnp.zeros((NE, 1), jnp.float32),
    }

    mask, loss_val = moe_forward(
        params, input_nodes, adjacency_index,
        temperature=1.0, data_shape=(N, F),
        adjacency_attr=adjacency_attr,
        k_list=k_list, expert_select=expert_select, loss_coef=0.01,
    )
    jax.block_until_ready((mask, loss_val))
    assert mask.shape == (E,) and mask.dtype == jnp.float32
    assert loss_val.shape == ()
    print("KERNEL_OK")
</pallas_src>

<mosaic_0001>
module attributes {stable_mosaic.version = 11 : i64} {
  func.func @_gating_kernel(%arg0: i32, %arg1: memref<16x8xf32, #tpu.memory_space<vmem>>, %arg2: memref<8x4xf32, #tpu.memory_space<vmem>>, %arg3: memref<16x4xf32, #tpu.memory_space<vmem>>, %arg4: memref<8x4xf32, #tpu.memory_space<vmem>>, %arg5: memref<8x4xf32, #tpu.memory_space<vmem>>) attributes {dimension_semantics = [#tpu.dimension_semantics<parallel>], iteration_bounds = array<i64: 1>, scalar_prefetch = 0 : i64, scratch_operands = 0 : i64, tpu.core_type = #tpu.core_type<tc>, window_params = [{transform_indices = @transform_0, window_bounds = array<i64: 16, 8>}, {pipeline_mode = #tpu.pipeline_mode<synchronous>, transform_indices = @transform_1, window_bounds = array<i64: 8, 4>}, {transform_indices = @transform_2, window_bounds = array<i64: 16, 4>}, {transform_indices = @transform_3, window_bounds = array<i64: 8, 4>}, {transform_indices = @transform_4, window_bounds = array<i64: 8, 4>}]} {
    %c0 = arith.constant 0 : index
    %c0_0 = arith.constant 0 : index
    %0 = vector.load %arg1[%c0, %c0_0] : memref<16x8xf32, #tpu.memory_space<vmem>>, vector<16x8xf32>
    %c0_1 = arith.constant 0 : index
    %c0_2 = arith.constant 0 : index
    %1 = vector.load %arg2[%c0_1, %c0_2] : memref<8x4xf32, #tpu.memory_space<vmem>>, vector<8x4xf32>
    %cst = arith.constant dense<0.000000e+00> : vector<16x4xf32>
    %2 = tpu.matmul %0, %1, %cst {dimension_numbers = #tpu.dot_dimension_numbers<[1], [0], [0], [1], [0, 0, 1, 1], [], []>} : vector<16x8xf32>, vector<8x4xf32>, vector<16x4xf32> -> vector<16x4xf32>
    %3 = tpu.iota {dimensions = array<i32: 1>} : vector<16x4xi32>
    %cst_3 = arith.constant 0.000000e+00 : f32
    %4 = vector.broadcast %cst_3 : f32 to vector<16x4xf32>
    %5 = vector.extract_strided_slice %2 {offsets = [0, 0], sizes = [16, 1], strides = [1, 1]} : vector<16x4xf32> to vector<16x1xf32>
    %6 = vector.broadcast %5 : vector<16x1xf32> to vector<16x4xf32>
    %7 = arith.cmpf ogt, %6, %2 : vector<16x4xf32>
    %8 = vector.broadcast %5 : vector<16x1xf32> to vector<16x4xf32>
    %9 = arith.cmpf oeq, %8, %2 : vector<16x4xf32>
    %c0_i32 = arith.constant 0 : i32
    %10 = vector.broadcast %c0_i32 : i32 to vector<16x4xi32>
    %11 = arith.cmpi sgt, %3, %10 : vector<16x4xi32>
    %12 = arith.andi %9, %11 : vector<16x4xi1>
    %13 = arith.ori %7, %12 : vector<16x4xi1>
    %14 = arith.extui %13 : vector<16x4xi1> to vector<16x4xi32>
    %15 = arith.sitofp %14 : vector<16x4xi32> to vector<16x4xf32>
    %16 = arith.addf %4, %15 : vector<16x4xf32>
    %17 = vector.extract_strided_slice %2 {offsets = [0, 1], sizes = [16, 1], strides = [1, 1]} : vector<16x4xf32> to vector<16x1xf32>
    %18 = vector.broadcast %17 : vector<16x1xf32> to vector<16x4xf32>
    %19 = arith.cmpf ogt, %18, %2 : vector<16x4xf32>
    %20 = vector.broadcast %17 : vector<16x1xf32> to vector<16x4xf32>
    %21 = arith.cmpf oeq, %20, %2 : vector<16x4xf32>
    %c1_i32 = arith.constant 1 : i32
    %22 = vector.broadcast %c1_i32 : i32 to vector<16x4xi32>
    %23 = arith.cmpi sgt, %3, %22 : vector<16x4xi32>
    %24 = arith.andi %21, %23 : vector<16x4xi1>
    %25 = arith.ori %19, %24 : vector<16x4xi1>
    %26 = arith.extui %25 : vector<16x4xi1> to vector<16x4xi32>
    %27 = arith.sitofp %26 : vector<16x4xi32> to vector<16x4xf32>
    %28 = arith.addf %16, %27 : vector<16x4xf32>
    %29 = vector.extract_strided_slice %2 {offsets = [0, 2], sizes = [16, 1], strides = [1, 1]} : vector<16x4xf32> to vector<16x1xf32>
    %30 = vector.broadcast %29 : vector<16x1xf32> to vector<16x4xf32>
    %31 = arith.cmpf ogt, %30, %2 : vector<16x4xf32>
    %32 = vector.broadcast %29 : vector<16x1xf32> to vector<16x4xf32>
    %33 = arith.cmpf oeq, %32, %2 : vector<16x4xf32>
    %c2_i32 = arith.constant 2 : i32
    %34 = vector.broadcast %c2_i32 : i32 to vector<16x4xi32>
    %35 = arith.cmpi sgt, %3, %34 : vector<16x4xi32>
    %36 = arith.andi %33, %35 : vector<16x4xi1>
    %37 = arith.ori %31, %36 : vector<16x4xi1>
    %38 = arith.extui %37 : vector<16x4xi1> to vector<16x4xi32>
    %39 = arith.sitofp %38 : vector<16x4xi32> to vector<16x4xf32>
    %40 = arith.addf %28, %39 : vector<16x4xf32>
    %41 = vector.extract_strided_slice %2 {offsets = [0, 3], sizes = [16, 1], strides = [1, 1]} : vector<16x4xf32> to vector<16x1xf32>
    %42 = vector.broadcast %41 : vector<16x1xf32> to vector<16x4xf32>
    %43 = arith.cmpf ogt, %42, %2 : vector<16x4xf32>
    %44 = vector.broadcast %41 : vector<16x1xf32> to vector<16x4xf32>
    %45 = arith.cmpf oeq, %44, %2 : vector<16x4xf32>
    %c3_i32 = arith.constant 3 : i32
    %46 = vector.broadcast %c3_i32 : i32 to vector<16x4xi32>
    %47 = arith.cmpi sgt, %3, %46 : vector<16x4xi32>
    %48 = arith.andi %45, %47 : vector<16x4xi1>
    %49 = arith.ori %43, %48 : vector<16x4xi1>
    %50 = arith.extui %49 : vector<16x4xi1> to vector<16x4xi32>
    %51 = arith.sitofp %50 : vector<16x4xi32> to vector<16x4xf32>
    %52 = arith.addf %40, %51 : vector<16x4xf32>
    %cst_4 = arith.constant 2.000000e+00 : f32
    %53 = vector.broadcast %cst_4 : f32 to vector<16x4xf32>
    %54 = arith.cmpf olt, %52, %53 : vector<16x4xf32>
    %cst_5 = arith.constant dense<0xFF800000> : vector<16xf32>
    %55 = vector.multi_reduction <maximumf>, %2, %cst_5 [1] : vector<16x4xf32> to vector<16xf32>
    %56 = vector.shape_cast %55 : vector<16xf32> to vector<16x1xf32>
    %57 = vector.broadcast %56 : vector<16x1xf32> to vector<16x4xf32>
    %58 = arith.subf %2, %57 : vector<16x4xf32>
    %59 = math.exp %58 : vector<16x4xf32>
    %cst_6 = arith.constant 0.000000e+00 : f32
    %60 = vector.broadcast %cst_6 : f32 to vector<16x4xf32>
    %61 = arith.select %54, %59, %60 : vector<16x4xi1>, vector<16x4xf32>
    %cst_7 = arith.constant dense<0.000000e+00> : vector<16xf32>
    %62 = vector.multi_reduction <add>, %61, %cst_7 [1] : vector<16x4xf32> to vector<16xf32>
    %63 = vector.shape_cast %62 : vector<16xf32> to vector<16x1xf32>
    %64 = vector.broadcast %63 : vector<16x1xf32> to vector<16x4xf32>
    %65 = arith.divf %61, %64 : vector<16x4xf32>
    %c0_8 = arith.constant 0 : index
    %c0_9 = arith.constant 0 : index
    %66 = vector.load %arg3[%c0_8, %c0_9] : memref<16x4xf32, #tpu.memory_space<vmem>>, vector<16x4xf32>
    tpu.vector_store %arg3[%c0_8, %c0_9], %65 {strides = array<i32>} : memref<16x4xf32, #tpu.memory_space<vmem>>, vector<16x4xf32>,
    %67 = tpu.iota {dimensions = array<i32: 0>} : vector<16x4xi32>
    %c16_i32 = arith.constant 16 : i32
    %68 = arith.muli %arg0, %c16_i32 : i32
    %69 = vector.broadcast %68 : i32 to vector<16x4xi32>
    %70 = arith.addi %67, %69 : vector<16x4xi32>
    %c16_i32_10 = arith.constant 16 : i32
    %71 = vector.broadcast %c16_i32_10 : i32 to vector<16x4xi32>
    %72 = arith.cmpi slt, %70, %71 : vector<16x4xi32>
    %cst_11 = arith.constant 0.000000e+00 : f32
    %73 = vector.broadcast %cst_11 : f32 to vector<16x4xf32>
    %74 = arith.select %72, %65, %73 : vector<16x4xi1>, vector<16x4xf32>
    %cst_12 = arith.constant dense<0.000000e+00> : vector<4xf32>
    %75 = vector.multi_reduction <add>, %74, %cst_12 [0] : vector<16x4xf32> to vector<4xf32>
    %76 = vector.shape_cast %75 : vector<4xf32> to vector<1x4xf32>
    %cst_13 = arith.constant 0.000000e+00 : f32
    %77 = vector.broadcast %cst_13 : f32 to vector<16x4xf32>
    %78 = arith.cmpf ogt, %65, %77 : vector<16x4xf32>
    %79 = arith.andi %72, %78 : vector<16x4xi1>
    %cst_14 = arith.constant 1.000000e+00 : f32
    %cst_15 = arith.constant 0.000000e+00 : f32
    %80 = vector.broadcast %cst_14 : f32 to vector<16x4xf32>
    %81 = vector.broadcast %cst_15 : f32 to vector<16x4xf32>
    %82 = arith.select %79, %80, %81 : vector<16x4xi1>, vector<16x4xf32>
    %cst_16 = arith.constant dense<0.000000e+00> : vector<4xf32>
    %83 = vector.multi_reduction <add>, %82, %cst_16 [0] : vector<16x4xf32> to vector<4xf32>
    %84 = vector.shape_cast %83 : vector<4xf32> to vector<1x4xf32>
    %cst_17 = arith.constant 1.250000e-01 : f32
    %85 = vector.broadcast %cst_17 : f32 to vector<1x4xf32>
    %86 = arith.mulf %76, %85 : vector<1x4xf32>
    %87 = vector.shape_cast %86 : vector<1x4xf32> to vector<1x4xf32>
    %88 = vector.broadcast %87 : vector<1x4xf32> to vector<8x4xf32>
    %c0_18 = arith.constant 0 : index
    %c0_19 = arith.constant 0 : index
    %89 = vector.load %arg4[%c0_18, %c0_19] : memref<8x4xf32, #tpu.memory_space<vmem>>, vector<8x4xf32>
    tpu.vector_store %arg4[%c0_18, %c0_19], %88 {strides = array<i32>} : memref<8x4xf32, #tpu.memory_space<vmem>>, vector<8x4xf32>,
    %cst_20 = arith.constant 1.250000e-01 : f32
    %90 = vector.broadcast %cst_20 : f32 to vector<1x4xf32>
    %91 = arith.mulf %84, %90 : vector<1x4xf32>
    %92 = vector.shape_cast %91 : vector<1x4xf32> to vector<1x4xf32>
    %93 = vector.broadcast %92 : vector<1x4xf32> to vector<8x4xf32>
    %c0_21 = arith.constant 0 : index
    %c0_22 = arith.constant 0 : index
    %94 = vector.load %arg5[%c0_21, %c0_22] : memref<8x4xf32, #tpu.memory_space<vmem>>, vector<8x4xf32>
    tpu.vector_store %arg5[%c0_21, %c0_22], %93 {strides = array<i32>} : memref<8x4xf32, #tpu.memory_space<vmem>>, vector<8x4xf32>,
    return
  }
  func.func @transform_0(%arg0: i32) -> (i32, i32) {
    %c0_i32 = arith.constant 0 : i32
    %c0_i32_0 = arith.constant 0 : i32
    return %arg0, %c0_i32 : i32, i32
  }
  func.func @transform_1(%arg0: i32) -> (i32, i32) {
    %c0_i32 = arith.constant 0 : i32
    %c0_i32_0 = arith.constant 0 : i32
    %c0_i32_1 = arith.constant 0 : i32
    return %c0_i32, %c0_i32_0 : i32, i32
  }
  func.func @transform_2(%arg0: i32) -> (i32, i32) {
    %c0_i32 = arith.constant 0 : i32
    %c0_i32_0 = arith.constant 0 : i32
    return %arg0, %c0_i32 : i32, i32
  }
  func.func @transform_3(%arg0: i32) -> (i32, i32) {
    %c0_i32 = arith.constant 0 : i32
    %c0_i32_0 = arith.constant 0 : i32
    return %arg0, %c0_i32 : i32, i32
  }
  func.func @transform_4(%arg0: i32) -> (i32, i32) {
    %c0_i32 = arith.constant 0 : i32
    %c0_i32_0 = arith.constant 0 : i32
    return %arg0, %c0_i32 : i32, i32
  }
}

</mosaic_0001>

<llo_original>
// kernel: tpu_custom_call.1
$region0: #{tpu_custom_call.1}
  #allocation0 [shape = 'u32[]', space=smem, size = 0x4, offset = 0x4, fixed_abs, tag = 'smem constant byte address 0x4 - core index']
  #allocation1 [shape = 'u32[144,128]{1,0:T(1,128)}', space=vmem, size = 0x12000, scoped, tag = 'internal scratch']
  %s0 = inlined_call_operand.vmem [shape: f32[16,8], index: 0, kind: input, shape index: {}]
  %s1 = inlined_call_operand.vmem [shape: f32[8,4], index: 1, kind: input, shape index: {}]
  %s2 = inlined_call_operand.vmem [shape: f32[16,4], index: 2, kind: output, shape index: {0}]
  %s3 = inlined_call_operand.vmem [shape: f32[8,4], index: 3, kind: output, shape index: {1}]
  %s4 = inlined_call_operand.vmem [shape: f32[8,4], index: 4, kind: output, shape index: {2}]
  %5 = xla_tuple %s2, %s3, %s4
  %s6 = sld [smem:[#allocation0]]
  $region34: #{tpu_custom_call.1} parent=0
    _
  %s8 = ssub.s32 1, %s6
  %s9 = scalar_select 0, %s8, %s6
  // Predicated region
  $region2: #{tpu_custom_call.1} parent=0 // pred_check
    _
  $region3: #{tpu_custom_call.1} parent=0 // pred_check_branch
    %11 = sbr.rel (0) target = $region5
  $region4: #{tpu_custom_call.1} parent=0 // pred_region
    _
  $region5: #{tpu_custom_call.1} parent=0 // pred_fallthru
    _
  // Predicated region
  $region6: #{tpu_custom_call.1} parent=0 // pred_check
    _
  $region7: #{tpu_custom_call.1} parent=0 // pred_check_branch
    %13 = sbr.rel (0) target = $region9
  $region8: #{tpu_custom_call.1} parent=0 // pred_region
    _
  $region9: #{tpu_custom_call.1} parent=0 // pred_fallthru
    _
  %v14 = vld [vmem:[%s0] sm:$0xff]
  %v15 = vld [vmem:[%s0 + $0x8] sm:$0xff]
  %v16 = vld [vmem:[%s1] sm:$0xff]
  %vm17 = vcmask 64512
  %v19 = vsel %vm17, %v14, 0
  %v22 = vsel %vm17, %v15, 0
  %24 = vmatprep.subr.mxu0 0.0
  %25 = vmatpush1.msra.mxu0 0.0
  %26 = vmatprep.subr.mxu0 0.0
  %27 = vmatpush1.msra.mxu0 0.0
  %28 = vmatprep.subr.mxu0 0.0
  %29 = vmatpush1.msra.mxu0 0.0
  %30 = vmatprep.subr.mxu0 0.0
  %31 = vmatpush1.msra.mxu0 0.0
  %32 = vmatprep.subr.mxu0 0.0
  %33 = vmatpush1.msra.mxu0 0.0
  %34 = vmatprep.subr.mxu0 0.0
  %35 = vmatpush1.msra.mxu0 0.0
  %36 = vmatprep.subr.mxu0 0.0
  %37 = vmatpush1.msra.mxu0 0.0
  %38 = vmatprep.subr.mxu0 0.0
  %39 = vmatpush1.msra.mxu0 0.0
  %40 = vmatprep.subr.mxu0 0.0
  %41 = vmatpush1.msra.mxu0 0.0
  %42 = vmatprep.subr.mxu0 0.0
  %43 = vmatpush1.msra.mxu0 0.0
  %44 = vmatprep.subr.mxu0 0.0
  %45 = vmatpush1.msra.mxu0 0.0
  %46 = vmatprep.subr.mxu0 0.0
  %47 = vmatpush1.msra.mxu0 0.0
  %48 = vmatprep.subr.mxu0 0.0
  %49 = vmatpush1.msra.mxu0 0.0
  %50 = vmatprep.subr.mxu0 0.0
  %51 = vmatpush1.msra.mxu0 0.0
  %52 = vmatprep.subr.mxu0 0.0
  %53 = vmatpush1.msra.mxu0 0.0
  %54 = vmatprep.subr.mxu0 0.0
  %55 = vmatpush1.msra.mxu0 %v16
  %56 = vmatprep.subr.mxu0 0.0
  %57 = vmatpush2.msra.mxu0 0.0
  %58 = vmatprep.subr.mxu0 0.0
  %59 = vmatpush2.msra.mxu0 0.0
  %60 = vmatprep.subr.mxu0 0.0
  %61 = vmatpush2.msra.mxu0 0.0
  %62 = vmatprep.subr.mxu0 0.0
  %63 = vmatpush2.msra.mxu0 0.0
  %64 = vmatprep.subr.mxu0 0.0
  %65 = vmatpush2.msra.mxu0 0.0
  %66 = vmatprep.subr.mxu0 0.0
  %67 = vmatpush2.msra.mxu0 0.0
  %68 = vmatprep.subr.mxu0 0.0
  %69 = vmatpush2.msra.mxu0 0.0
  %70 = vmatprep.subr.mxu0 0.0
  %71 = vmatpush2.msra.mxu0 0.0
  %72 = vmatprep.subr.mxu0 0.0
  %73 = vmatpush2.msra.mxu0 0.0
  %74 = vmatprep.subr.mxu0 0.0
  %75 = vmatpush2.msra.mxu0 0.0
  %76 = vmatprep.subr.mxu0 0.0
  %77 = vmatpush2.msra.mxu0 0.0
  %78 = vmatprep.subr.mxu0 0.0
  %79 = vmatpush2.msra.mxu0 0.0
  %80 = vmatprep.subr.mxu0 0.0
  %81 = vmatpush2.msra.mxu0 0.0
  %82 = vmatprep.subr.mxu0 0.0
  %83 = vmatpush2.msra.mxu0 0.0
  %84 = vmatprep.subr.mxu0 0.0
  %85 = vmatpush2.msra.mxu0 0.0
  %86 = vmatprep.subr.mxu0 0.0
  %87 = vmatpush2.msra.mxu0 0.0
  %88 = vmatprep.mubr.f32.mxu0 0.0
  %89 = vmatmul.mubr.f32.gmra.mxu0 %v19
  %v90 = vpop.f32.mrf.mxu0
  %v91 = vadd.f32 0.0, %v90
  %v92 = vpop.f32.mrf.mxu0
  %93 = vmatprep.mubr.f32.mxu0 0.0
  %94 = vmatmul.mubr.f32.gmra.mxu0 %v22
  %v95 = vpop.f32.mrf.mxu0
  %v96 = vadd.f32 0.0, %v95
  %v97 = vpop.f32.mrf.mxu0
  %98 = vdwg.mxu0
  %v99 = vlaneseq
  %v100 = vand.u32 %v99, 127
  %102 = vset.pattern.permute.xlu0 0
  %103 = vperm.xlu0 %102, %v91
  %v104 = vpop.permute.xlu0 %103
  %107 = vset.pattern.permute.xlu0 0
  %108 = vperm.xlu0 %107, %v96
  %v109 = vpop.permute.xlu0 %108
  %vm111 = vcmp.gt.f32.partialorder %v104, %v91
  %vm112 = vcmp.gt.f32.partialorder %v109, %v96
  %vm113 = vcmp.eq.f32.partialorder %v104, %v91
  %vm114 = vcmp.eq.f32.partialorder %v109, %v96
  %vm115 = vcmp.gt.s32.totalorder %v100, 0
  %vm116 = vmand %vm113, %vm115
  %vm117 = vmand %vm114, %vm115
  %vm118 = vmor %vm111, %vm116
  %vm119 = vmor %vm112, %vm117
  %v120 = vsel %vm118, 1, 0
  %v121 = vsel %vm119, 1, 0
  %v122 = vcvt.s32.f32 %v120
  %v123 = vcvt.s32.f32 %v121
  %v124 = vadd.f32 %v122, 0.0
  %v125 = vadd.f32 %v123, 0.0
  %126 = vset.pattern.permute.xlu0 1
  %127 = vperm.xlu0 %126, %v91
  %v128 = vpop.permute.xlu0 %127
  %130 = vset.pattern.permute.xlu0 1
  %131 = vperm.xlu0 %130, %v96
  %v132 = vpop.permute.xlu0 %131
  %vm134 = vcmp.gt.f32.partialorder %v128, %v91
  %vm135 = vcmp.gt.f32.partialorder %v132, %v96
  %vm136 = vcmp.eq.f32.partialorder %v128, %v91
  %vm137 = vcmp.eq.f32.partialorder %v132, %v96
  %vm138 = vcmp.gt.s32.totalorder %v100, 1
  %vm139 = vmand %vm136, %vm138
  %vm140 = vmand %vm137, %vm138
  %vm141 = vmor %vm134, %vm139
  %vm142 = vmor %vm135, %vm140
  %v143 = vsel %vm141, 1, 0
  %v144 = vsel %vm142, 1, 0
  %v145 = vcvt.s32.f32 %v143
  %v146 = vcvt.s32.f32 %v144
  %v147 = vadd.f32 %v124, %v145
  %v148 = vadd.f32 %v125, %v146
  %149 = vset.pattern.permute.xlu0 2
  %150 = vperm.xlu0 %149, %v91
  %v151 = vpop.permute.xlu0 %150
  %153 = vset.pattern.permute.xlu0 2
  %154 = vperm.xlu0 %153, %v96
  %v155 = vpop.permute.xlu0 %154
  %vm157 = vcmp.gt.f32.partialorder %v151, %v91
  %vm158 = vcmp.gt.f32.partialorder %v155, %v96
  %vm159 = vcmp.eq.f32.partialorder %v151, %v91
  %vm160 = vcmp.eq.f32.partialorder %v155, %v96
  %vm161 = vcmp.gt.s32.totalorder %v100, 2
  %vm162 = vmand %vm159, %vm161
  %vm163 = vmand %vm160, %vm161
  %vm164 = vmor %vm157, %vm162
  %vm165 = vmor %vm158, %vm163
  %v166 = vsel %vm164, 1, 0
  %v167 = vsel %vm165, 1, 0
  %v168 = vcvt.s32.f32 %v166
  %v169 = vcvt.s32.f32 %v167
  %v170 = vadd.f32 %v147, %v168
  %v171 = vadd.f32 %v148, %v169
  %172 = vset.pattern.permute.xlu0 3
  %173 = vperm.xlu0 %172, %v91
  %v174 = vpop.permute.xlu0 %173
  %176 = vset.pattern.permute.xlu0 3
  %177 = vperm.xlu0 %176, %v96
  %v178 = vpop.permute.xlu0 %177
  %vm180 = vcmp.gt.f32.partialorder %v174, %v91
  %vm181 = vcmp.gt.f32.partialorder %v178, %v96
  %vm182 = vcmp.eq.f32.partialorder %v174, %v91
  %vm183 = vcmp.eq.f32.partialorder %v178, %v96
  %vm184 = vcmp.gt.s32.totalorder %v100, 3
  %vm185 = vmand %vm182, %vm184
  %vm186 = vmand %vm183, %vm184
  %vm187 = vmor %vm180, %vm185
  %vm188 = vmor %vm181, %vm186
  %v189 = vsel %vm187, 1, 0
  %v190 = vsel %vm188, 1, 0
  %v191 = vcvt.s32.f32 %v189
  %v192 = vcvt.s32.f32 %v190
  %v193 = vadd.f32 %v170, %v191
  %v194 = vadd.f32 %v171, %v192
  %vm195 = vcmp.lt.f32.partialorder %v193, 2.0
  %vm196 = vcmp.lt.f32.partialorder %v194, 2.0
  %vm197 = vcmask 31744
  %v198 = vsel %vm197, %v91, -inf
  %199 = vmax.xlane.f32.xlu0 %v198
  %v200 = vpop.xlane.xlu0 %199
  %v201 = vsel %vm197, %v96, -inf
  %202 = vmax.xlane.f32.xlu0 %v201
  %v203 = vpop.xlane.xlu0 %202
  %v204 = vsub.f32 %v91, %v200
  %v205 = vsub.f32 %v96, %v203
  %v206 = vmul.f32 %v204, 1.442695
  %v207 = vpow.pop %v206
  %v208 = vmul.f32 %v205, 1.442695
  %v209 = vpow.pop %v208
  %v210 = vsel %vm195, %v207, 0.0
  %v211 = vsel %vm196, %v209, 0.0
  %v212 = vsel %vm197, %v210, 0.0
  %213 = vadd.xlane.f32.xlu0 %v212
  %v214 = vpop.xlane.xlu0 %213
  %v215 = vsel %vm197, %v211, 0.0
  %216 = vadd.xlane.f32.xlu0 %v215
  %v217 = vpop.xlane.xlu0 %216
  %v218 = vrcp.pop %v214
  %v219 = vmul.f32 %v210, %v218
  %v220 = vrcp.pop %v217
  %v221 = vmul.f32 %v211, %v220
  %222 = vst.msk [vmem:[%s2] sm:$0xff] %vm197, %v219
  %223 = vst.msk [vmem:[%s2 + $0x8] sm:$0xff] %vm197, %v221
  %v224 = vlaneseq
  %v225 = vshrl.u32 %v224, 7
  %v226 = vadd.s32 %v225, 8
  %s227 = smul.u32 0, 16
  %v228 = vstv %s227
  %v229 = vadd.s32 %v225, %v228
  %v230 = vadd.s32 %v226, %v228
  %vm231 = vcmp.lt.s32.totalorder %v229, 16
  %vm232 = vcmp.lt.s32.totalorder %v230, 16
  %v233 = vsel %vm231, %v219, 0.0
  %v234 = vsel %vm232, %v221, 0.0
  %v235 = vsel %vm197, %v233, 0.0
  %v236 = vsel %vm197, %v234, 0.0
  %v237 = vadd.f32 %v235, %v236
  %v238 = vrot.slane %v237, 4
  %v239 = vadd.f32 %v237, %v238
  %v240 = vrot.slane %v239, 2
  %v241 = vadd.f32 %v239, %v240
  %v242 = vrot.slane %v241, 1
  %v243 = vadd.f32 %v241, %v242
  %vm244 = vcmp.gt.f32.partialorder %v219, 0.0
  %vm245 = vcmp.gt.f32.partialorder %v221, 0.0
  %vm246 = vmand %vm231, %vm244
  %vm247 = vmand %vm232, %vm245
  %v248 = vsel %vm246, 1.0, 0.0
  %v249 = vsel %vm247, 1.0, 0.0
  %v250 = vsel %vm197, %v248, 0.0
  %v251 = vsel %vm197, %v249, 0.0
  %v252 = vadd.f32 %v250, %v251
  %v253 = vrot.slane %v252, 4
  %v254 = vadd.f32 %v252, %v253
  %v255 = vrot.slane %v254, 2
  %v256 = vadd.f32 %v254, %v255
  %v257 = vrot.slane %v256, 1
  %v258 = vadd.f32 %v256, %v257
  %v259 = vmul.f32 %v243, 0.125
  %260 = vst.msk [vmem:[%s3] sm:$0xff] %vm197, %v259
  %v261 = vmul.f32 %v258, 0.125
  %262 = vst.msk [vmem:[%s4] sm:$0xff] %vm197, %v261
  // Predicated region
  $region10: #{tpu_custom_call.1} parent=0 // pred_check
    _
  $region11: #{tpu_custom_call.1} parent=0 // pred_check_branch
    %264 = sbr.rel (0) target = $region13
  $region12: #{tpu_custom_call.1} parent=0 // pred_region
    _
  $region13: #{tpu_custom_call.1} parent=0 // pred_fallthru
    _
  // Predicated region
  $region14: #{tpu_custom_call.1} parent=0 // pred_check
    _
  $region15: #{tpu_custom_call.1} parent=0 // pred_check_branch
    %266 = sbr.rel (0) target = $region17
  $region16: #{tpu_custom_call.1} parent=0 // pred_region
    _
  $region17: #{tpu_custom_call.1} parent=0 // pred_fallthru
    _
  // Predicated region
  $region18: #{tpu_custom_call.1} parent=0 // pred_check
    _
  $region19: #{tpu_custom_call.1} parent=0 // pred_check_branch
    %268 = sbr.rel (0) target = $region21
  $region20: #{tpu_custom_call.1} parent=0 // pred_region
    _
  $region21: #{tpu_custom_call.1} parent=0 // pred_fallthru
    _
  // Predicated region
  $region22: #{tpu_custom_call.1} parent=0 // pred_check
    _
  $region23: #{tpu_custom_call.1} parent=0 // pred_check_branch
    %270 = sbr.rel (0) target = $region25
  $region24: #{tpu_custom_call.1} parent=0 // pred_region
    _
  $region25: #{tpu_custom_call.1} parent=0 // pred_fallthru
    _
  // Predicated region
  $region26: #{tpu_custom_call.1} parent=0 // pred_check
    _
  $region27: #{tpu_custom_call.1} parent=0 // pred_check_branch
    %272 = sbr.rel (0) target = $region29
  $region28: #{tpu_custom_call.1} parent=0 // pred_region
    _
  $region29: #{tpu_custom_call.1} parent=0 // pred_fallthru
    _
  // Predicated region
  $region30: #{tpu_custom_call.1} parent=0 // pred_check
    _
  $region31: #{tpu_custom_call.1} parent=0 // pred_check_branch
    %274 = sbr.rel (0) target = $region33
  $region32: #{tpu_custom_call.1} parent=0 // pred_region
    _
  $region33: #{tpu_custom_call.1} parent=0 // pred_fallthru
    _

</llo_original>
